<compile_context>
chip_gen: v6e
topology: v6e:2x2x1
jax: 0.10.0
libtpu: 0.0.40
codegen_flags: <defaults>
</compile_context>

<pallas_src>
import functools
import math

import jax
import jax.numpy as jnp
from jax import lax
from jax.experimental import pallas as pl
from jax.experimental.pallas import tpu as pltpu


def _round_up(n, m):
    return ((n + m - 1) // m) * m


def _vmem_limit(bytes_needed):
    # Generous headroom over the residency estimate, clamped to sane bounds.
    return int(min(max(int(bytes_needed * 1.5) + (2 << 20), 32 << 20), 100 << 20))


def _resident_spec(block_shape, index_map, single_buffer):
    """BlockSpec for an operand that never changes across the grid."""
    if single_buffer:
        return pl.BlockSpec(block_shape, index_map,
                            pipeline_mode=pl.Buffered(1))
    return pl.BlockSpec(block_shape, index_map)


# ---------------------------------------------------------------------------
# Phase 1 (parallel): xg = x @ U_cat + b_cat for all timesteps in one GEMM.
# ---------------------------------------------------------------------------
def _input_proj_kernel(x_ref, u_ref, b_ref, xg_ref):
    xg_ref[...] = (
        jnp.dot(x_ref[...], u_ref[...], preferred_element_type=jnp.float32)
        + b_ref[...])


def _input_projection(x_flat, u_cat, b_cat, *, tm, single_buffer):
    mp, ip = x_flat.shape
    g = u_cat.shape[1]
    w_itm = jnp.dtype(u_cat.dtype).itemsize
    x_itm = jnp.dtype(x_flat.dtype).itemsize
    resident = (ip * g * w_itm + g * 4) * (1 if single_buffer else 2)
    streamed = 2 * (tm * ip * x_itm + tm * g * 4)
    return pl.pallas_call(
        _input_proj_kernel,
        out_shape=jax.ShapeDtypeStruct((mp, g), jnp.float32),
        grid=(mp // tm,),
        in_specs=[
            pl.BlockSpec((tm, ip), lambda m: (m, 0)),                   # x rows
            _resident_spec((ip, g), lambda m: (0, 0), single_buffer),   # U_cat
            _resident_spec((1, g), lambda m: (0, 0), single_buffer),    # b_cat
        ],
        out_specs=pl.BlockSpec((tm, g), lambda m: (m, 0)),
        compiler_params=pltpu.CompilerParams(
            dimension_semantics=("parallel",),
            vmem_limit_bytes=_vmem_limit(resident + streamed)),
    )(x_flat, u_cat, b_cat)


# ---------------------------------------------------------------------------
# Phase 2 (serial): the recurrence.  One grid step == Tc timesteps.
# ---------------------------------------------------------------------------
def _gru_rollout_kernel(xg_ref, bits_ref, h0_ref, wcat_ref, whbar_ref,
                        out_ref, h_carry,
                        *, tc, hp, keep_threshold, keep_scale):
    @pl.when(pl.program_id(0) == 0)
    def _():
        h_carry[...] = h0_ref[...]

    w_cat = wcat_ref[...]        # [Hp, 2Hp]  (W_r | W_z), VMEM-resident
    w_hbar = whbar_ref[...]      # [Hp, Hp]
    thr = jnp.uint32(keep_threshold)
    scale = jnp.float32(keep_scale)

    def step(i, h):
        xg = xg_ref[i]           # [B, 3Hp] f32: x_t @ U_cat + b_cat (hoisted)
        hg = jnp.dot(h.astype(w_cat.dtype), w_cat,
                     preferred_element_type=jnp.float32)        # [B, 2Hp]
        r = jax.nn.sigmoid(xg[:, 0 * hp:1 * hp] + hg[:, 0 * hp:1 * hp])
        z = jax.nn.sigmoid(xg[:, 1 * hp:2 * hp] + hg[:, 1 * hp:2 * hp])
        hbar = jnp.tanh(
            xg[:, 2 * hp:3 * hp]
            + jnp.dot((r * h).astype(w_hbar.dtype), w_hbar,
                      preferred_element_type=jnp.float32))
        hnext = z * h + (1.0 - z) * hbar
        # Always-on dropout (train AND eval, per the module): Bernoulli(1-p)
        # via a single integer threshold compare + inverted-p scaling.
        keep = bits_ref[i] >= thr
        hdrop = jnp.where(keep, hnext * scale, jnp.zeros_like(hnext))
        out_ref[i] = hdrop.astype(out_ref.dtype)
        return hdrop

    h_carry[...] = lax.fori_loop(0, tc, step, h_carry[...], unroll=True)


def _gru_recurrence(xg, bits, h0, w_cat, w_hbar, *, tc, hp, bp,
                    keep_threshold, keep_scale, single_buffer):
    tp = xg.shape[0]
    w_itm = jnp.dtype(w_cat.dtype).itemsize
    resident = (3 * hp * hp * w_itm + bp * hp * 4) * (1 if single_buffer else 2)
    streamed = 2 * (tc * bp * 3 * hp * 4     # xg
                    + tc * bp * hp * 4       # bits
                    + tc * bp * hp * 4)      # out
    scratch = bp * hp * 4
    kernel = functools.partial(
        _gru_rollout_kernel, tc=tc, hp=hp,
        keep_threshold=keep_threshold, keep_scale=keep_scale)
    return pl.pallas_call(
        kernel,
        out_shape=jax.ShapeDtypeStruct((tp, bp, hp), jnp.float32),
        grid=(tp // tc,),
        in_specs=[
            pl.BlockSpec((tc, bp, 3 * hp), lambda c: (c, 0, 0)),   # xg (stream)
            pl.BlockSpec((tc, bp, hp), lambda c: (c, 0, 0)),       # bits (stream)
            _resident_spec((bp, hp), lambda c: (0, 0), single_buffer),      # h0
            _resident_spec((hp, 2 * hp), lambda c: (0, 0), single_buffer),  # W_r|W_z
            _resident_spec((hp, hp), lambda c: (0, 0), single_buffer),      # W_hbar
        ],
        out_specs=pl.BlockSpec((tc, bp, hp), lambda c: (c, 0, 0)),
        scratch_shapes=[pltpu.VMEM((bp, hp), jnp.float32)],        # h carry
        compiler_params=pltpu.CompilerParams(
            dimension_semantics=("arbitrary",),   # T-chunks carry h: serial
            vmem_limit_bytes=_vmem_limit(resident + streamed + scratch)),
    )(xg, bits, h0, w_cat, w_hbar)


# ---------------------------------------------------------------------------
# Public wrappers.
# ---------------------------------------------------------------------------
def forgetful_gru_rollout(x_seq, h0, params, dropout_p, dropout_bits,
                          *, compute_dtype=jnp.float32, chunk_t=8,
                          proj_rows=512):
    """Runs T ForgetfulGRUCell steps (each step == the PyTorch forward, fed
    back as the next h).  Returns the post-dropout h_t for every step.

    x_seq:        [T, B, input_size]
    h0:           [B, hidden_size]
    dropout_bits: [T, B, hidden_size] uint32 (fresh bits per step & element)
    compute_dtype: dtype of the MXU operands only.  Use jnp.bfloat16 on
      v6e/v7x for MXU peak & halved weight VMEM; h carry / gates / accum stay
      float32 either way (validate tolerance vs T before enabling).
    """
    T, B, I = x_seq.shape
    H = h0.shape[1]
    ip = _round_up(I, 128)
    hp = _round_up(H, 128)
    bp = _round_up(B, 8)
    tc = max(1, min(chunk_t, T))
    tp = _round_up(T, tc)
    cd = compute_dtype

    def pad_u(u):    # [I, H] -> [Ip, Hp]
        return jnp.pad(u, ((0, ip - I), (0, hp - H))).astype(cd)

    def pad_w(w):    # [H, H] -> [Hp, Hp]
        return jnp.pad(w, ((0, hp - H), (0, hp - H))).astype(cd)

    def pad_b(b):    # [H] -> [1, Hp]
        return jnp.pad(b, (0, hp - H)).reshape(1, hp).astype(jnp.float32)

    u_cat = jnp.concatenate(
        [pad_u(params["U_r"]), pad_u(params["U_z"]), pad_u(params["U_hbar"])],
        axis=1)                                                    # [Ip, 3Hp]
    b_cat = jnp.concatenate(
        [pad_b(params["b_r"]), pad_b(params["b_z"]), pad_b(params["b_hbar"])],
        axis=1)                                                    # [1, 3Hp]
    w_cat = jnp.concatenate(
        [pad_w(params["W_r"]), pad_w(params["W_z"])], axis=1)      # [Hp, 2Hp]
    w_hbar = pad_w(params["W_hbar"])                               # [Hp, Hp]

    x_p = jnp.pad(x_seq, ((0, tp - T), (0, bp - B), (0, ip - I))).astype(cd)
    bits_p = jnp.pad(dropout_bits.astype(jnp.uint32),
                     ((0, tp - T), (0, bp - B), (0, hp - H)))
    h0_p = jnp.pad(h0, ((0, bp - B), (0, hp - H))).astype(jnp.float32)

    # Dropout threshold / scale (matches the pure-JAX reference exactly).
    p = float(dropout_p)
    keep_threshold = min(int(round(p * 2.0 ** 32)), 2 ** 32 - 1)
    keep_scale = 1.0 / (1.0 - p) if p < 1.0 else 0.0

    # Phase-1 row tiling: one full-M GEMM over all T*B rows.
    m_rows = tp * bp
    tm = min(_round_up(proj_rows, 8), m_rows)
    m_pad = _round_up(m_rows, tm)
    x_flat = x_p.reshape(m_rows, ip)
    if m_pad != m_rows:
        x_flat = jnp.pad(x_flat, ((0, m_pad - m_rows), (0, 0)))

    def run(single_buffer):
        xg_flat = _input_projection(x_flat, u_cat, b_cat, tm=tm,
                                    single_buffer=single_buffer)
        xg = xg_flat[:m_rows].reshape(tp, bp, 3 * hp)
        return _gru_recurrence(
            xg, bits_p, h0_p, w_cat, w_hbar, tc=tc, hp=hp, bp=bp,
            keep_threshold=keep_threshold, keep_scale=keep_scale,
            single_buffer=single_buffer)

    try:
        out = run(single_buffer=True)
    except Exception:
        # pl.Buffered(1) not supported by this JAX build -> default buffering.
        out = run(single_buffer=False)

    return out[:T, :B, :H]


def forgetful_gru_cell(x, h, params, dropout_p, dropout_bits,
                       *, compute_dtype=jnp.float32):
    """Exact single-step equivalent of ForgetfulGRUCell.forward(x, h)."""
    return forgetful_gru_rollout(x[None], h, params, dropout_p,
                                 dropout_bits[None],
                                 compute_dtype=compute_dtype, chunk_t=1)[0]


def init_params(key, input_size, hidden_size):
    """Deterministic init matching reset_parameters: U(-stdv, stdv)."""
    stdv = 1.0 / math.sqrt(hidden_size)
    names_shapes = [
        ("U_r", (input_size, hidden_size)),
        ("W_r", (hidden_size, hidden_size)),
        ("b_r", (hidden_size,)),
        ("U_z", (input_size, hidden_size)),
        ("W_z", (hidden_size, hidden_size)),
        ("b_z", (hidden_size,)),
        ("U_hbar", (input_size, hidden_size)),
        ("W_hbar", (hidden_size, hidden_size)),
        ("b_hbar", (hidden_size,)),
    ]
    params = {}
    keys = jax.random.split(key, len(names_shapes))
    for k, (name, shape) in zip(keys, names_shapes):
        params[name] = jax.random.uniform(
            k, shape, dtype=jnp.float32, minval=-stdv, maxval=stdv)
    return params


def _ref_rollout(x_seq, h0, params, dropout_p, dropout_bits):
    """Pure-JAX reference rollout using the same dropout bits."""
    thr = jnp.uint32(min(int(round(float(dropout_p) * 2.0 ** 32)), 2 ** 32 - 1))
    scale = 1.0 / (1.0 - float(dropout_p))
    with jax.default_matmul_precision("highest"):
        h = h0
        outs = []
        for t in range(x_seq.shape[0]):
            x = x_seq[t]
            r = jax.nn.sigmoid(x @ params["U_r"] + h @ params["W_r"] + params["b_r"])
            z = jax.nn.sigmoid(x @ params["U_z"] + h @ params["W_z"] + params["b_z"])
            hbar = jnp.tanh(x @ params["U_hbar"] + (r * h) @ params["W_hbar"]
                            + params["b_hbar"])
            hnext = z * h + (1.0 - z) * hbar
            keep = dropout_bits[t] >= thr
            h = jnp.where(keep, hnext * scale, 0.0)
            outs.append(h)
    return jnp.stack(outs)


if __name__ == "__main__":
    T = 8
    B = 8
    INPUT_SIZE = 16
    HIDDEN_SIZE = 32
    EVAL_DROPOUT = 0.2   # plays the role of args.eval_dropout / TRAIN_DROPOUT_RATE

    root = jax.random.PRNGKey(0)
    kp, kx, kh, kd = jax.random.split(root, 4)

    params = init_params(kp, INPUT_SIZE, HIDDEN_SIZE)
    x_seq = jax.random.normal(kx, (T, B, INPUT_SIZE), dtype=jnp.float32)
    h0 = jax.random.normal(kh, (B, HIDDEN_SIZE), dtype=jnp.float32)
    # Fresh dropout bits per step & element (no mask reuse across timesteps).
    bits = jax.random.bits(kd, (T, B, HIDDEN_SIZE), dtype=jnp.uint32)

    out = forgetful_gru_rollout(x_seq, h0, params, EVAL_DROPOUT, bits)
    out = jax.block_until_ready(out)

    ref = _ref_rollout(x_seq, h0, params, EVAL_DROPOUT, bits)
    assert out.shape == (T, B, HIDDEN_SIZE)
    max_err = float(jnp.max(jnp.abs(out - ref)))
    assert max_err < 1e-2, f"kernel mismatch vs reference: max_err={max_err}"

    print("KERNEL_OK")
</pallas_src>

<mosaic_0001>
module attributes {stable_mosaic.version = 11 : i64} {
  func.func @_input_proj_kernel(%arg0: i32, %arg1: memref<64x128xf32, #tpu.memory_space<vmem>>, %arg2: memref<128x384xf32, #tpu.memory_space<vmem>>, %arg3: memref<1x384xf32, #tpu.memory_space<vmem>>, %arg4: memref<64x384xf32, #tpu.memory_space<vmem>>) attributes {dimension_semantics = [#tpu.dimension_semantics<parallel>], iteration_bounds = array<i64: 1>, scalar_prefetch = 0 : i64, scratch_operands = 0 : i64, tpu.core_type = #tpu.core_type<tc>, window_params = [{transform_indices = @transform_0, window_bounds = array<i64: 64, 128>}, {pipeline_mode = #tpu.pipeline_mode<synchronous>, transform_indices = @transform_1, window_bounds = array<i64: 128, 384>}, {pipeline_mode = #tpu.pipeline_mode<synchronous>, transform_indices = @transform_2, window_bounds = array<i64: 1, 384>}, {transform_indices = @transform_3, window_bounds = array<i64: 64, 384>}]} {
    %c0 = arith.constant 0 : index
    %c0_0 = arith.constant 0 : index
    %0 = vector.load %arg1[%c0, %c0_0] : memref<64x128xf32, #tpu.memory_space<vmem>>, vector<64x128xf32>
    %c0_1 = arith.constant 0 : index
    %c0_2 = arith.constant 0 : index
    %1 = vector.load %arg2[%c0_1, %c0_2] : memref<128x384xf32, #tpu.memory_space<vmem>>, vector<128x384xf32>
    %cst = arith.constant dense<0.000000e+00> : vector<64x384xf32>
    %2 = tpu.matmul %0, %1, %cst {dimension_numbers = #tpu.dot_dimension_numbers<[1], [0], [0], [1], [0, 0, 1, 1], [], []>} : vector<64x128xf32>, vector<128x384xf32>, vector<64x384xf32> -> vector<64x384xf32>
    %c0_3 = arith.constant 0 : index
    %c0_4 = arith.constant 0 : index
    %3 = vector.load %arg3[%c0_3, %c0_4] : memref<1x384xf32, #tpu.memory_space<vmem>>, vector<1x384xf32>
    %4 = vector.broadcast %3 : vector<1x384xf32> to vector<64x384xf32>
    %5 = arith.addf %2, %4 : vector<64x384xf32>
    %c0_5 = arith.constant 0 : index
    %c0_6 = arith.constant 0 : index
    %6 = vector.load %arg4[%c0_5, %c0_6] : memref<64x384xf32, #tpu.memory_space<vmem>>, vector<64x384xf32>
    tpu.vector_store %arg4[%c0_5, %c0_6], %5 {strides = array<i32>} : memref<64x384xf32, #tpu.memory_space<vmem>>, vector<64x384xf32>,
    return
  }
  func.func @transform_0(%arg0: i32) -> (i32, i32) {
    %c0_i32 = arith.constant 0 : i32
    %c0_i32_0 = arith.constant 0 : i32
    return %arg0, %c0_i32 : i32, i32
  }
  func.func @transform_1(%arg0: i32) -> (i32, i32) {
    %c0_i32 = arith.constant 0 : i32
    %c0_i32_0 = arith.constant 0 : i32
    %c0_i32_1 = arith.constant 0 : i32
    return %c0_i32, %c0_i32_0 : i32, i32
  }
  func.func @transform_2(%arg0: i32) -> (i32, i32) {
    %c0_i32 = arith.constant 0 : i32
    %c0_i32_0 = arith.constant 0 : i32
    %c0_i32_1 = arith.constant 0 : i32
    return %c0_i32, %c0_i32_0 : i32, i32
  }
  func.func @transform_3(%arg0: i32) -> (i32, i32) {
    %c0_i32 = arith.constant 0 : i32
    %c0_i32_0 = arith.constant 0 : i32
    return %arg0, %c0_i32 : i32, i32
  }
}

module attributes {stable_mosaic.version = 11 : i64} {
  func.func @_input_proj_kernel(%arg0: i32, %arg1: memref<64x128xf32, #tpu.memory_space<vmem>>, %arg2: memref<128x384xf32, #tpu.memory_space<vmem>>, %arg3: memref<1x384xf32, #tpu.memory_space<vmem>>, %arg4: memref<64x384xf32, #tpu.memory_space<vmem>>) attributes {dimension_semantics = [#tpu.dimension_semantics<parallel>], iteration_bounds = array<i64: 1>, scalar_prefetch = 0 : i64, scratch_operands = 0 : i64, tpu.core_type = #tpu.core_type<tc>, window_params = [{transform_indices = @transform_0, window_bounds = array<i64: 64, 128>}, {pipeline_mode = #tpu.pipeline_mode<synchronous>, transform_indices = @transform_1, window_bounds = array<i64: 128, 384>}, {pipeline_mode = #tpu.pipeline_mode<synchronous>, transform_indices = @transform_2, window_bounds = array<i64: 1, 384>}, {transform_indices = @transform_3, window_bounds = array<i64: 64, 384>}]} {
    %c0 = arith.constant 0 : index
    %c0_0 = arith.constant 0 : index
    %0 = vector.load %arg1[%c0, %c0_0] : memref<64x128xf32, #tpu.memory_space<vmem>>, vector<64x128xf32>
    %c0_1 = arith.constant 0 : index
    %c0_2 = arith.constant 0 : index
    %1 = vector.load %arg2[%c0_1, %c0_2] : memref<128x384xf32, #tpu.memory_space<vmem>>, vector<128x384xf32>
    %cst = arith.constant dense<0.000000e+00> : vector<64x384xf32>
    %2 = tpu.matmul %0, %1, %cst {dimension_numbers = #tpu.dot_dimension_numbers<[1], [0], [0], [1], [0, 0, 1, 1], [], []>} : vector<64x128xf32>, vector<128x384xf32>, vector<64x384xf32> -> vector<64x384xf32>
    %c0_3 = arith.constant 0 : index
    %c0_4 = arith.constant 0 : index
    %3 = vector.load %arg3[%c0_3, %c0_4] : memref<1x384xf32, #tpu.memory_space<vmem>>, vector<1x384xf32>
    %4 = vector.broadcast %3 : vector<1x384xf32> to vector<64x384xf32>
    %5 = arith.addf %2, %4 : vector<64x384xf32>
    %c0_5 = arith.constant 0 : index
    %c0_6 = arith.constant 0 : index
    %6 = vector.load %arg4[%c0_5, %c0_6] : memref<64x384xf32, #tpu.memory_space<vmem>>, vector<64x384xf32>
    tpu.vector_store %arg4[%c0_5, %c0_6], %5 {strides = array<i32>} : memref<64x384xf32, #tpu.memory_space<vmem>>, vector<64x384xf32>,
    return
  }
  func.func @transform_0(%arg0: i32) -> (i32, i32) {
    %c0_i32 = arith.constant 0 : i32
    %c0_i32_0 = arith.constant 0 : i32
    return %arg0, %c0_i32 : i32, i32
  }
  func.func @transform_1(%arg0: i32) -> (i32, i32) {
    %c0_i32 = arith.constant 0 : i32
    %c0_i32_0 = arith.constant 0 : i32
    %c0_i32_1 = arith.constant 0 : i32
    return %c0_i32, %c0_i32_0 : i32, i32
  }
  func.func @transform_2(%arg0: i32) -> (i32, i32) {
    %c0_i32 = arith.constant 0 : i32
    %c0_i32_0 = arith.constant 0 : i32
    %c0_i32_1 = arith.constant 0 : i32
    return %c0_i32, %c0_i32_0 : i32, i32
  }
  func.func @transform_3(%arg0: i32) -> (i32, i32) {
    %c0_i32 = arith.constant 0 : i32
    %c0_i32_0 = arith.constant 0 : i32
    return %arg0, %c0_i32 : i32, i32
  }
}

</mosaic_0001>

<llo_original>
// kernel: tpu_custom_call.1
$region0: #{tpu_custom_call.1}
  #allocation0 [shape = 'u32[]', space=smem, size = 0x4, offset = 0x4, fixed_abs, tag = 'smem constant byte address 0x4 - core index']
  #allocation1 [shape = 'u32[144,128]{1,0:T(1,128)}', space=vmem, size = 0x12000, scoped, tag = 'internal scratch']
  %s0 = inlined_call_operand.hbm [shape: f32[64,128], index: 0, kind: input, shape index: {}]
  %s1 = inlined_call_operand.hbm [shape: f32[128,384], index: 1, kind: input, shape index: {}]
  %s2 = inlined_call_operand.vmem [shape: f32[1,384], index: 2, kind: input, shape index: {}]
  %s3 = inlined_call_operand.hbm [shape: f32[64,384], index: 3, kind: output, shape index: {}]
  %s4 = sld [smem:[#allocation0]]
  $region30: #{tpu_custom_call.1} parent=0
    _
  %s6 = ssub.s32 1, %s4
  %s7 = scalar_select 0, %s6, %s4
  $region1: #{tpu_custom_call.1} parent=0
    #allocation2 [shape = 'u8[32768]{0}', space=vmem, size = 0x8000, scoped, tag = 'input window, operand 0, single buffered']
    #allocation3 [shape = 's32[1]{0}', space=sflag, size = 0x4, scoped, tag = 'scoped memory for tpu_custom_call.1']
    #allocation4 [shape = 's32[1]{0}', space=sflag, size = 0x4, scoped, tag = 'scoped memory for tpu_custom_call.1']
    #allocation5 [shape = 'u8[196608]{0}', space=vmem, size = 0x30000, scoped, tag = 'input window, operand 1, single buffered']
    #allocation6 [shape = 's32[1]{0}', space=sflag, size = 0x4, scoped, tag = 'scoped memory for tpu_custom_call.1']
    #allocation7 [shape = 'u8[98304]{0}', space=vmem, size = 0x18000, scoped, tag = 'output window, operand 0, single buffered']
    %8 = vsyncpa [#allocation3], 0
    %9 = vsyncpa [#allocation6], 0
    %10 = vsyncpa [#allocation4], 0
    // Predicated region
    $region2: #{tpu_custom_call.1} parent=1 // pred_check
      _
    $region3: #{tpu_custom_call.1} parent=1 // pred_check_branch
      %12 = sbr.rel (0) target = $region5
    $region4: #{tpu_custom_call.1} parent=1 // pred_region
      %s14 = ssub.s32 1024, 1024
      %15 = vsyncadd [#allocation3], %s14
      %s16 = sshll.u32 [#allocation2], 4
      %s17 = int_to_ptr.vmem [resolvable:$true] %s16
      %22 = dma.hbm_to_vmem [thread:$0]  %s0, 1024, %s17, [#allocation3], 128, 128, 8
    $region5: #{tpu_custom_call.1} parent=1 // pred_fallthru
      _
    // Predicated region
    $region6: #{tpu_custom_call.1} parent=1 // pred_check
      _
    $region7: #{tpu_custom_call.1} parent=1 // pred_check_branch
      %24 = sbr.rel (0) target = $region9
    $region8: #{tpu_custom_call.1} parent=1 // pred_region
      %s26 = ssub.s32 6144, 6144
      %27 = vsyncadd [#allocation6], %s26
      %s28 = sshll.u32 [#allocation5], 4
      %s29 = int_to_ptr.vmem [resolvable:$true] %s28
      %34 = dma.hbm_to_vmem [thread:$0]  %s1, 6144, %s29, [#allocation6], 384, 384, 24
    $region9: #{tpu_custom_call.1} parent=1 // pred_fallthru
      _
    // Predicated region
    $region10: #{tpu_custom_call.1} parent=1 // pred_check
      _
    $region11: #{tpu_custom_call.1} parent=1 // pred_check_branch
      %36 = sbr.rel (0) target = $region13
    $region12: #{tpu_custom_call.1} parent=1 // pred_region
      _
    $region13: #{tpu_custom_call.1} parent=1 // pred_fallthru
      _
    // Predicated region
    $region14: #{tpu_custom_call.1} parent=1 // pred_check
      _
    $region15: #{tpu_custom_call.1} parent=1 // pred_check_branch
      %38 = sbr.rel (0) target = $region17
    $region16: #{tpu_custom_call.1} parent=1 // pred_region
      %39 = dma.done [#allocation3], 1024
    $region17: #{tpu_custom_call.1} parent=1 // pred_fallthru
      _
    // Predicated region
    $region18: #{tpu_custom_call.1} parent=1 // pred_check
      _
    $region19: #{tpu_custom_call.1} parent=1 // pred_check_branch
      %41 = sbr.rel (0) target = $region21
    $region20: #{tpu_custom_call.1} parent=1 // pred_region
      %42 = dma.done [#allocation6], 6144
    $region21: #{tpu_custom_call.1} parent=1 // pred_fallthru
      _
    %v43 = vld [vmem:[#allocation2] sm:$0xff]
    %v44 = vld [vmem:[#allocation2 + $0x8] sm:$0xff]
    %v45 = vld [vmem:[#allocation2 + $0x10] sm:$0xff]
    %v46 = vld [vmem:[#allocation2 + $0x18] sm:$0xff]
    %v47 = vld [vmem:[#allocation2 + $0x20] sm:$0xff]
    %v48 = vld [vmem:[#allocation2 + $0x28] sm:$0xff]
    %v49 = vld [vmem:[#allocation2 + $0x30] sm:$0xff]
    %v50 = vld [vmem:[#allocation2 + $0x38] sm:$0xff]
    %v51 = vld [vmem:[#allocation5] sm:$0xff]
    %v52 = vld [vmem:[#allocation5 + $0x8] sm:$0xff]
    %v53 = vld [vmem:[#allocation5 + $0x10] sm:$0xff]
    %v54 = vld [vmem:[#allocation5 + $0x18] sm:$0xff]
    %v55 = vld [vmem:[#allocation5 + $0x20] sm:$0xff]
    %v56 = vld [vmem:[#allocation5 + $0x28] sm:$0xff]
    %v57 = vld [vmem:[#allocation5 + $0x30] sm:$0xff]
    %v58 = vld [vmem:[#allocation5 + $0x38] sm:$0xff]
    %v59 = vld [vmem:[#allocation5 + $0x40] sm:$0xff]
    %v60 = vld [vmem:[#allocation5 + $0x48] sm:$0xff]
    %v61 = vld [vmem:[#allocation5 + $0x50] sm:$0xff]
    %v62 = vld [vmem:[#allocation5 + $0x58] sm:$0xff]
    %v63 = vld [vmem:[#allocation5 + $0x60] sm:$0xff]
    %v64 = vld [vmem:[#allocation5 + $0x68] sm:$0xff]
    %v65 = vld [vmem:[#allocation5 + $0x70] sm:$0xff]
    %v66 = vld [vmem:[#allocation5 + $0x78] sm:$0xff]
    %v67 = vld [vmem:[#allocation5 + $0x80] sm:$0xff]
    %v68 = vld [vmem:[#allocation5 + $0x88] sm:$0xff]
    %v69 = vld [vmem:[#allocation5 + $0x90] sm:$0xff]
    %v70 = vld [vmem:[#allocation5 + $0x98] sm:$0xff]
    %v71 = vld [vmem:[#allocation5 + $0xa0] sm:$0xff]
    %v72 = vld [vmem:[#allocation5 + $0xa8] sm:$0xff]
    %v73 = vld [vmem:[#allocation5 + $0xb0] sm:$0xff]
    %v74 = vld [vmem:[#allocation5 + $0xb8] sm:$0xff]
    %v75 = vld [vmem:[#allocation5 + $0xc0] sm:$0xff]
    %v76 = vld [vmem:[#allocation5 + $0xc8] sm:$0xff]
    %v77 = vld [vmem:[#allocation5 + $0xd0] sm:$0xff]
    %v78 = vld [vmem:[#allocation5 + $0xd8] sm:$0xff]
    %v79 = vld [vmem:[#allocation5 + $0xe0] sm:$0xff]
    %v80 = vld [vmem:[#allocation5 + $0xe8] sm:$0xff]
    %v81 = vld [vmem:[#allocation5 + $0xf0] sm:$0xff]
    %v82 = vld [vmem:[#allocation5 + $0xf8] sm:$0xff]
    %v83 = vld [vmem:[#allocation5 + $0x100] sm:$0xff]
    %v84 = vld [vmem:[#allocation5 + $0x108] sm:$0xff]
    %v85 = vld [vmem:[#allocation5 + $0x110] sm:$0xff]
    %v86 = vld [vmem:[#allocation5 + $0x118] sm:$0xff]
    %v87 = vld [vmem:[#allocation5 + $0x120] sm:$0xff]
    %v88 = vld [vmem:[#allocation5 + $0x128] sm:$0xff]
    %v89 = vld [vmem:[#allocation5 + $0x130] sm:$0xff]
    %v90 = vld [vmem:[#allocation5 + $0x138] sm:$0xff]
    %v91 = vld [vmem:[#allocation5 + $0x140] sm:$0xff]
    %v92 = vld [vmem:[#allocation5 + $0x148] sm:$0xff]
    %v93 = vld [vmem:[#allocation5 + $0x150] sm:$0xff]
    %v94 = vld [vmem:[#allocation5 + $0x158] sm:$0xff]
    %v95 = vld [vmem:[#allocation5 + $0x160] sm:$0xff]
    %v96 = vld [vmem:[#allocation5 + $0x168] sm:$0xff]
    %v97 = vld [vmem:[#allocation5 + $0x170] sm:$0xff]
    %v98 = vld [vmem:[#allocation5 + $0x178] sm:$0xff]
    %v99 = vld [vmem:[%s2] sm:$0x7]
    %v101 = vlaneseq
    %v102 = vshrl.u32 %v101, 7
    %v103 = vsub.s32 0, %v102
    %v104 = vrot.slane %v99, %v103
    %v105 = vlaneseq
    %v106 = vshrl.u32 %v105, 7
    %v107 = vsub.s32 1, %v106
    %v108 = vrot.slane %v99, %v107
    %v109 = vlaneseq
    %v110 = vshrl.u32 %v109, 7
    %v111 = vsub.s32 2, %v110
    %v112 = vrot.slane %v99, %v111
    %116 = vmatprep.subr.mxu0 %v97
    %117 = vmatpush1.msra.mxu0 %v96
    %118 = vmatprep.subr.mxu0 %v94
    %119 = vmatpush1.msra.mxu0 %v93
    %120 = vmatprep.subr.mxu0 %v91
    %121 = vmatpush1.msra.mxu0 %v90
    %122 = vmatprep.subr.mxu0 %v88
    %123 = vmatpush1.msra.mxu0 %v87
    %124 = vmatprep.subr.mxu0 %v85
    %125 = vmatpush1.msra.mxu0 %v84
    %126 = vmatprep.subr.mxu0 %v82
    %127 = vmatpush1.msra.mxu0 %v81
    %128 = vmatprep.subr.mxu0 %v79
    %129 = vmatpush1.msra.mxu0 %v78
    %130 = vmatprep.subr.mxu0 %v76
    %131 = vmatpush1.msra.mxu0 %v75
    %132 = vmatprep.subr.mxu0 %v73
    %133 = vmatpush1.msra.mxu0 %v72
    %134 = vmatprep.subr.mxu0 %v70
    %135 = vmatpush1.msra.mxu0 %v69
    %136 = vmatprep.subr.mxu0 %v67
    %137 = vmatpush1.msra.mxu0 %v66
    %138 = vmatprep.subr.mxu0 %v64
    %139 = vmatpush1.msra.mxu0 %v63
    %140 = vmatprep.subr.mxu0 %v61
    %141 = vmatpush1.msra.mxu0 %v60
    %142 = vmatprep.subr.mxu0 %v58
    %143 = vmatpush1.msra.mxu0 %v57
    %144 = vmatprep.subr.mxu0 %v55
    %145 = vmatpush1.msra.mxu0 %v54
    %146 = vmatprep.subr.mxu0 %v52
    %147 = vmatpush1.msra.mxu0 %v51
    %148 = vmatprep.subr.mxu0 0.0
    %149 = vmatpush2.msra.mxu0 0.0
    %150 = vmatprep.subr.mxu0 0.0
    %151 = vmatpush2.msra.mxu0 0.0
    %152 = vmatprep.subr.mxu0 0.0
    %153 = vmatpush2.msra.mxu0 0.0
    %154 = vmatprep.subr.mxu0 0.0
    %155 = vmatpush2.msra.mxu0 0.0
    %156 = vmatprep.subr.mxu0 0.0
    %157 = vmatpush2.msra.mxu0 0.0
    %158 = vmatprep.subr.mxu0 0.0
    %159 = vmatpush2.msra.mxu0 0.0
    %160 = vmatprep.subr.mxu0 0.0
    %161 = vmatpush2.msra.mxu0 0.0
    %162 = vmatprep.subr.mxu0 0.0
    %163 = vmatpush2.msra.mxu0 0.0
    %164 = vmatprep.subr.mxu0 0.0
    %165 = vmatpush2.msra.mxu0 0.0
    %166 = vmatprep.subr.mxu0 0.0
    %167 = vmatpush2.msra.mxu0 0.0
    %168 = vmatprep.subr.mxu0 0.0
    %169 = vmatpush2.msra.mxu0 0.0
    %170 = vmatprep.subr.mxu0 0.0
    %171 = vmatpush2.msra.mxu0 0.0
    %172 = vmatprep.subr.mxu0 0.0
    %173 = vmatpush2.msra.mxu0 0.0
    %174 = vmatprep.subr.mxu0 0.0
    %175 = vmatpush2.msra.mxu0 0.0
    %176 = vmatprep.subr.mxu0 0.0
    %177 = vmatpush2.msra.mxu0 0.0
    %178 = vmatprep.subr.mxu0 0.0
    %179 = vmatpush2.msra.mxu0 0.0
    %180 = vmatprep.mubr.f32.mxu0 0.0
    %181 = vmatmul.mubr.f32.gmra.mxu0 %v43
    %v182 = vpop.f32.mrf.mxu0
    %v183 = vadd.f32 %v104, %v182
    %v184 = vpop.f32.mrf.mxu0
    %v185 = vadd.f32 %v108, %v184
    %186 = vmatprep.mubr.f32.mxu0 0.0
    %187 = vmatmul.mubr.f32.gmra.mxu0 %v44
    %v188 = vpop.f32.mrf.mxu0
    %v189 = vadd.f32 %v104, %v188
    %v190 = vpop.f32.mrf.mxu0
    %v191 = vadd.f32 %v108, %v190
    %192 = vmatprep.mubr.f32.mxu0 0.0
    %193 = vmatmul.mubr.f32.gmra.mxu0 %v45
    %v194 = vpop.f32.mrf.mxu0
    %v195 = vadd.f32 %v104, %v194
    %v196 = vpop.f32.mrf.mxu0
    %v197 = vadd.f32 %v108, %v196
    %198 = vmatprep.mubr.f32.mxu0 0.0
    %199 = vmatmul.mubr.f32.gmra.mxu0 %v46
    %v200 = vpop.f32.mrf.mxu0
    %v201 = vadd.f32 %v104, %v200
    %v202 = vpop.f32.mrf.mxu0
    %v203 = vadd.f32 %v108, %v202
    %204 = vmatprep.mubr.f32.mxu0 0.0
    %205 = vmatmul.mubr.f32.gmra.mxu0 %v47
    %v206 = vpop.f32.mrf.mxu0
    %v207 = vadd.f32 %v104, %v206
    %v208 = vpop.f32.mrf.mxu0
    %v209 = vadd.f32 %v108, %v208
    %210 = vmatprep.mubr.f32.mxu0 0.0
    %211 = vmatmul.mubr.f32.gmra.mxu0 %v48
    %v212 = vpop.f32.mrf.mxu0
    %v213 = vadd.f32 %v104, %v212
    %v214 = vpop.f32.mrf.mxu0
    %v215 = vadd.f32 %v108, %v214
    %216 = vmatprep.mubr.f32.mxu0 0.0
    %217 = vmatmul.mubr.f32.gmra.mxu0 %v49
    %v218 = vpop.f32.mrf.mxu0
    %v219 = vadd.f32 %v104, %v218
    %v220 = vpop.f32.mrf.mxu0
    %v221 = vadd.f32 %v108, %v220
    %222 = vmatprep.mubr.f32.mxu0 0.0
    %223 = vmatmul.mubr.f32.gmra.mxu0 %v50
    %v224 = vpop.f32.mrf.mxu0
    %v225 = vadd.f32 %v104, %v224
    %v226 = vpop.f32.mrf.mxu0
    %v227 = vadd.f32 %v108, %v226
    %228 = vdwg.mxu0
    %229 = vmatprep.subr.mxu0 0.0
    %230 = vmatpush1.msra.mxu0 %v98
    %231 = vmatprep.subr.mxu0 0.0
    %232 = vmatpush1.msra.mxu0 %v95
    %233 = vmatprep.subr.mxu0 0.0
    %234 = vmatpush1.msra.mxu0 %v92
    %235 = vmatprep.subr.mxu0 0.0
    %236 = vmatpush1.msra.mxu0 %v89
    %237 = vmatprep.subr.mxu0 0.0
    %238 = vmatpush1.msra.mxu0 %v86
    %239 = vmatprep.subr.mxu0 0.0
    %240 = vmatpush1.msra.mxu0 %v83
    %241 = vmatprep.subr.mxu0 0.0
    %242 = vmatpush1.msra.mxu0 %v80
    %243 = vmatprep.subr.mxu0 0.0
    %244 = vmatpush1.msra.mxu0 %v77
    %245 = vmatprep.subr.mxu0 0.0
    %246 = vmatpush1.msra.mxu0 %v74
    %247 = vmatprep.subr.mxu0 0.0
    %248 = vmatpush1.msra.mxu0 %v71
    %249 = vmatprep.subr.mxu0 0.0
    %250 = vmatpush1.msra.mxu0 %v68
    %251 = vmatprep.subr.mxu0 0.0
    %252 = vmatpush1.msra.mxu0 %v65
    %253 = vmatprep.subr.mxu0 0.0
    %254 = vmatpush1.msra.mxu0 %v62
    %255 = vmatprep.subr.mxu0 0.0
    %256 = vmatpush1.msra.mxu0 %v59
    %257 = vmatprep.subr.mxu0 0.0
    %258 = vmatpush1.msra.mxu0 %v56
    %259 = vmatprep.subr.mxu0 0.0
    %260 = vmatpush1.msra.mxu0 %v53
    %261 = vmatprep.subr.mxu0 0.0
    %262 = vmatpush2.msra.mxu0 0.0
    %263 = vmatprep.subr.mxu0 0.0
    %264 = vmatpush2.msra.mxu0 0.0
    %265 = vmatprep.subr.mxu0 0.0
    %266 = vmatpush2.msra.mxu0 0.0
    %267 = vmatprep.subr.mxu0 0.0
    %268 = vmatpush2.msra.mxu0 0.0
    %269 = vmatprep.subr.mxu0 0.0
    %270 = vmatpush2.msra.mxu0 0.0
    %271 = vmatprep.subr.mxu0 0.0
    %272 = vmatpush2.msra.mxu0 0.0
    %273 = vmatprep.subr.mxu0 0.0
    %274 = vmatpush2.msra.mxu0 0.0
    %275 = vmatprep.subr.mxu0 0.0
    %276 = vmatpush2.msra.mxu0 0.0
    %277 = vmatprep.subr.mxu0 0.0
    %278 = vmatpush2.msra.mxu0 0.0
    %279 = vmatprep.subr.mxu0 0.0
    %280 = vmatpush2.msra.mxu0 0.0
    %281 = vmatprep.subr.mxu0 0.0
    %282 = vmatpush2.msra.mxu0 0.0
    %283 = vmatprep.subr.mxu0 0.0
    %284 = vmatpush2.msra.mxu0 0.0
    %285 = vmatprep.subr.mxu0 0.0
    %286 = vmatpush2.msra.mxu0 0.0
    %287 = vmatprep.subr.mxu0 0.0
    %288 = vmatpush2.msra.mxu0 0.0
    %289 = vmatprep.subr.mxu0 0.0
    %290 = vmatpush2.msra.mxu0 0.0
    %291 = vmatprep.subr.mxu0 0.0
    %292 = vmatpush2.msra.mxu0 0.0
    %293 = vmatprep.mubr.f32.mxu0 0.0
    %294 = vmatmul.mubr.f32.gmra.mxu0 %v43
    %v295 = vpop.f32.mrf.mxu0
    %v296 = vadd.f32 %v112, %v295
    %v297 = vpop.f32.mrf.mxu0
    %298 = vmatprep.mubr.f32.mxu0 0.0
    %299 = vmatmul.mubr.f32.gmra.mxu0 %v44
    %v300 = vpop.f32.mrf.mxu0
    %v301 = vadd.f32 %v112, %v300
    %v302 = vpop.f32.mrf.mxu0
    %303 = vmatprep.mubr.f32.mxu0 0.0
    %304 = vmatmul.mubr.f32.gmra.mxu0 %v45
    %v305 = vpop.f32.mrf.mxu0
    %v306 = vadd.f32 %v112, %v305
    %v307 = vpop.f32.mrf.mxu0
    %308 = vmatprep.mubr.f32.mxu0 0.0
    %309 = vmatmul.mubr.f32.gmra.mxu0 %v46
    %v310 = vpop.f32.mrf.mxu0
    %v311 = vadd.f32 %v112, %v310
    %v312 = vpop.f32.mrf.mxu0
    %313 = vmatprep.mubr.f32.mxu0 0.0
    %314 = vmatmul.mubr.f32.gmra.mxu0 %v47
    %v315 = vpop.f32.mrf.mxu0
    %v316 = vadd.f32 %v112, %v315
    %v317 = vpop.f32.mrf.mxu0
    %318 = vmatprep.mubr.f32.mxu0 0.0
    %319 = vmatmul.mubr.f32.gmra.mxu0 %v48
    %v320 = vpop.f32.mrf.mxu0
    %v321 = vadd.f32 %v112, %v320
    %v322 = vpop.f32.mrf.mxu0
    %323 = vmatprep.mubr.f32.mxu0 0.0
    %324 = vmatmul.mubr.f32.gmra.mxu0 %v49
    %v325 = vpop.f32.mrf.mxu0
    %v326 = vadd.f32 %v112, %v325
    %v327 = vpop.f32.mrf.mxu0
    %328 = vmatprep.mubr.f32.mxu0 0.0
    %329 = vmatmul.mubr.f32.gmra.mxu0 %v50
    %v330 = vpop.f32.mrf.mxu0
    %v331 = vadd.f32 %v112, %v330
    %v332 = vpop.f32.mrf.mxu0
    %333 = vdwg.mxu0
    %334 = vst [vmem:[#allocation7] sm:$0xff] %v183
    %335 = vst [vmem:[#allocation7 + $0x8] sm:$0xff] %v185
    %336 = vst [vmem:[#allocation7 + $0x10] sm:$0xff] %v296
    %337 = vst [vmem:[#allocation7 + $0x18] sm:$0xff] %v189
    %338 = vst [vmem:[#allocation7 + $0x20] sm:$0xff] %v191
    %339 = vst [vmem:[#allocation7 + $0x28] sm:$0xff] %v301
    %340 = vst [vmem:[#allocation7 + $0x30] sm:$0xff] %v195
    %341 = vst [vmem:[#allocation7 + $0x38] sm:$0xff] %v197
    %342 = vst [vmem:[#allocation7 + $0x40] sm:$0xff] %v306
    %343 = vst [vmem:[#allocation7 + $0x48] sm:$0xff] %v201
    %344 = vst [vmem:[#allocation7 + $0x50] sm:$0xff] %v203
    %345 = vst [vmem:[#allocation7 + $0x58] sm:$0xff] %v311
    %346 = vst [vmem:[#allocation7 + $0x60] sm:$0xff] %v207
    %347 = vst [vmem:[#allocation7 + $0x68] sm:$0xff] %v209
    %348 = vst [vmem:[#allocation7 + $0x70] sm:$0xff] %v316
    %349 = vst [vmem:[#allocation7 + $0x78] sm:$0xff] %v213
    %350 = vst [vmem:[#allocation7 + $0x80] sm:$0xff] %v215
    %351 = vst [vmem:[#allocation7 + $0x88] sm:$0xff] %v321
    %352 = vst [vmem:[#allocation7 + $0x90] sm:$0xff] %v219
    %353 = vst [vmem:[#allocation7 + $0x98] sm:$0xff] %v221
    %354 = vst [vmem:[#allocation7 + $0xa0] sm:$0xff] %v326
    %355 = vst [vmem:[#allocation7 + $0xa8] sm:$0xff] %v225
    %356 = vst [vmem:[#allocation7 + $0xb0] sm:$0xff] %v227
    %357 = vst [vmem:[#allocation7 + $0xb8] sm:$0xff] %v331
    // Predicated region
    $region22: #{tpu_custom_call.1} parent=1 // pred_check
      _
    $region23: #{tpu_custom_call.1} parent=1 // pred_check_branch
      %359 = sbr.rel (0) target = $region25
    $region24: #{tpu_custom_call.1} parent=1 // pred_region
      %s361 = ssub.s32 3072, 3072
      %362 = vsyncadd [#allocation4], %s361
      %s363 = sshll.u32 [#allocation7], 4
      %s364 = int_to_ptr.vmem [resolvable:$true] %s363
      %369 = dma.vmem_to_hbm [thread:$0]  %s364, 3072, %s3, [#allocation4], 384, 384, 24
    $region25: #{tpu_custom_call.1} parent=1 // pred_fallthru
      _
    // Predicated region
    $region26: #{tpu_custom_call.1} parent=1 // pred_check
      _
    $region27: #{tpu_custom_call.1} parent=1 // pred_check_branch
      %371 = sbr.rel (0) target = $region29
    $region28: #{tpu_custom_call.1} parent=1 // pred_region
      %372 = dma.done [#allocation4], 3072
    $region29: #{tpu_custom_call.1} parent=1 // pred_fallthru
      _
    %373 = vsyncpa [#allocation3], 1
    %374 = vsyncpa [#allocation6], 1
    %375 = vsyncpa [#allocation4], 1

// kernel: tpu_custom_call.1
$region0: #{tpu_custom_call.1}
  #allocation0 [shape = 'u32[]', space=smem, size = 0x4, offset = 0x4, fixed_abs, tag = 'smem constant byte address 0x4 - core index']
  #allocation1 [shape = 'u32[144,128]{1,0:T(1,128)}', space=vmem, size = 0x12000, scoped, tag = 'internal scratch']
  %s0 = inlined_call_operand.hbm [shape: f32[64,128], index: 0, kind: input, shape index: {}]
  %s1 = inlined_call_operand.hbm [shape: f32[128,384], index: 1, kind: input, shape index: {}]
  %s2 = inlined_call_operand.vmem [shape: f32[1,384], index: 2, kind: input, shape index: {}]
  %s3 = inlined_call_operand.hbm [shape: f32[64,384], index: 3, kind: output, shape index: {}]
  %s4 = sld [smem:[#allocation0]]
  $region30: #{tpu_custom_call.1} parent=0
    _
  %s6 = ssub.s32 1, %s4
  %s7 = scalar_select 0, %s6, %s4
  $region1: #{tpu_custom_call.1} parent=0
    #allocation2 [shape = 'u8[32768]{0}', space=vmem, size = 0x8000, scoped, tag = 'input window, operand 0, single buffered']
    #allocation3 [shape = 's32[1]{0}', space=sflag, size = 0x4, scoped, tag = 'scoped memory for tpu_custom_call.1']
    #allocation4 [shape = 's32[1]{0}', space=sflag, size = 0x4, scoped, tag = 'scoped memory for tpu_custom_call.1']
    #allocation5 [shape = 'u8[196608]{0}', space=vmem, size = 0x30000, scoped, tag = 'input window, operand 1, single buffered']
    #allocation6 [shape = 's32[1]{0}', space=sflag, size = 0x4, scoped, tag = 'scoped memory for tpu_custom_call.1']
    #allocation7 [shape = 'u8[98304]{0}', space=vmem, size = 0x18000, scoped, tag = 'output window, operand 0, single buffered']
    %8 = vsyncpa [#allocation3], 0
    %9 = vsyncpa [#allocation6], 0
    %10 = vsyncpa [#allocation4], 0
    // Predicated region
    $region2: #{tpu_custom_call.1} parent=1 // pred_check
      _
    $region3: #{tpu_custom_call.1} parent=1 // pred_check_branch
      %12 = sbr.rel (0) target = $region5
    $region4: #{tpu_custom_call.1} parent=1 // pred_region
      %s14 = ssub.s32 1024, 1024
      %15 = vsyncadd [#allocation3], %s14
      %s16 = sshll.u32 [#allocation2], 4
      %s17 = int_to_ptr.vmem [resolvable:$true] %s16
      %22 = dma.hbm_to_vmem [thread:$0]  %s0, 1024, %s17, [#allocation3], 128, 128, 8
    $region5: #{tpu_custom_call.1} parent=1 // pred_fallthru
      _
    // Predicated region
    $region6: #{tpu_custom_call.1} parent=1 // pred_check
      _
    $region7: #{tpu_custom_call.1} parent=1 // pred_check_branch
      %24 = sbr.rel (0) target = $region9
    $region8: #{tpu_custom_call.1} parent=1 // pred_region
      %s26 = ssub.s32 6144, 6144
      %27 = vsyncadd [#allocation6], %s26
      %s28 = sshll.u32 [#allocation5], 4
      %s29 = int_to_ptr.vmem [resolvable:$true] %s28
      %34 = dma.hbm_to_vmem [thread:$0]  %s1, 6144, %s29, [#allocation6], 384, 384, 24
    $region9: #{tpu_custom_call.1} parent=1 // pred_fallthru
      _
    // Predicated region
    $region10: #{tpu_custom_call.1} parent=1 // pred_check
      _
    $region11: #{tpu_custom_call.1} parent=1 // pred_check_branch
      %36 = sbr.rel (0) target = $region13
    $region12: #{tpu_custom_call.1} parent=1 // pred_region
      _
    $region13: #{tpu_custom_call.1} parent=1 // pred_fallthru
      _
    // Predicated region
    $region14: #{tpu_custom_call.1} parent=1 // pred_check
      _
    $region15: #{tpu_custom_call.1} parent=1 // pred_check_branch
      %38 = sbr.rel (0) target = $region17
    $region16: #{tpu_custom_call.1} parent=1 // pred_region
      %39 = dma.done [#allocation3], 1024
    $region17: #{tpu_custom_call.1} parent=1 // pred_fallthru
      _
    // Predicated region
    $region18: #{tpu_custom_call.1} parent=1 // pred_check
      _
    $region19: #{tpu_custom_call.1} parent=1 // pred_check_branch
      %41 = sbr.rel (0) target = $region21
    $region20: #{tpu_custom_call.1} parent=1 // pred_region
      %42 = dma.done [#allocation6], 6144
    $region21: #{tpu_custom_call.1} parent=1 // pred_fallthru
      _
    %v43 = vld [vmem:[#allocation2] sm:$0xff]
    %v44 = vld [vmem:[#allocation2 + $0x8] sm:$0xff]
    %v45 = vld [vmem:[#allocation2 + $0x10] sm:$0xff]
    %v46 = vld [vmem:[#allocation2 + $0x18] sm:$0xff]
    %v47 = vld [vmem:[#allocation2 + $0x20] sm:$0xff]
    %v48 = vld [vmem:[#allocation2 + $0x28] sm:$0xff]
    %v49 = vld [vmem:[#allocation2 + $0x30] sm:$0xff]
    %v50 = vld [vmem:[#allocation2 + $0x38] sm:$0xff]
    %v51 = vld [vmem:[#allocation5] sm:$0xff]
    %v52 = vld [vmem:[#allocation5 + $0x8] sm:$0xff]
    %v53 = vld [vmem:[#allocation5 + $0x10] sm:$0xff]
    %v54 = vld [vmem:[#allocation5 + $0x18] sm:$0xff]
    %v55 = vld [vmem:[#allocation5 + $0x20] sm:$0xff]
    %v56 = vld [vmem:[#allocation5 + $0x28] sm:$0xff]
    %v57 = vld [vmem:[#allocation5 + $0x30] sm:$0xff]
    %v58 = vld [vmem:[#allocation5 + $0x38] sm:$0xff]
    %v59 = vld [vmem:[#allocation5 + $0x40] sm:$0xff]
    %v60 = vld [vmem:[#allocation5 + $0x48] sm:$0xff]
    %v61 = vld [vmem:[#allocation5 + $0x50] sm:$0xff]
    %v62 = vld [vmem:[#allocation5 + $0x58] sm:$0xff]
    %v63 = vld [vmem:[#allocation5 + $0x60] sm:$0xff]
    %v64 = vld [vmem:[#allocation5 + $0x68] sm:$0xff]
    %v65 = vld [vmem:[#allocation5 + $0x70] sm:$0xff]
    %v66 = vld [vmem:[#allocation5 + $0x78] sm:$0xff]
    %v67 = vld [vmem:[#allocation5 + $0x80] sm:$0xff]
    %v68 = vld [vmem:[#allocation5 + $0x88] sm:$0xff]
    %v69 = vld [vmem:[#allocation5 + $0x90] sm:$0xff]
    %v70 = vld [vmem:[#allocation5 + $0x98] sm:$0xff]
    %v71 = vld [vmem:[#allocation5 + $0xa0] sm:$0xff]
    %v72 = vld [vmem:[#allocation5 + $0xa8] sm:$0xff]
    %v73 = vld [vmem:[#allocation5 + $0xb0] sm:$0xff]
    %v74 = vld [vmem:[#allocation5 + $0xb8] sm:$0xff]
    %v75 = vld [vmem:[#allocation5 + $0xc0] sm:$0xff]
    %v76 = vld [vmem:[#allocation5 + $0xc8] sm:$0xff]
    %v77 = vld [vmem:[#allocation5 + $0xd0] sm:$0xff]
    %v78 = vld [vmem:[#allocation5 + $0xd8] sm:$0xff]
    %v79 = vld [vmem:[#allocation5 + $0xe0] sm:$0xff]
    %v80 = vld [vmem:[#allocation5 + $0xe8] sm:$0xff]
    %v81 = vld [vmem:[#allocation5 + $0xf0] sm:$0xff]
    %v82 = vld [vmem:[#allocation5 + $0xf8] sm:$0xff]
    %v83 = vld [vmem:[#allocation5 + $0x100] sm:$0xff]
    %v84 = vld [vmem:[#allocation5 + $0x108] sm:$0xff]
    %v85 = vld [vmem:[#allocation5 + $0x110] sm:$0xff]
    %v86 = vld [vmem:[#allocation5 + $0x118] sm:$0xff]
    %v87 = vld [vmem:[#allocation5 + $0x120] sm:$0xff]
    %v88 = vld [vmem:[#allocation5 + $0x128] sm:$0xff]
    %v89 = vld [vmem:[#allocation5 + $0x130] sm:$0xff]
    %v90 = vld [vmem:[#allocation5 + $0x138] sm:$0xff]
    %v91 = vld [vmem:[#allocation5 + $0x140] sm:$0xff]
    %v92 = vld [vmem:[#allocation5 + $0x148] sm:$0xff]
    %v93 = vld [vmem:[#allocation5 + $0x150] sm:$0xff]
    %v94 = vld [vmem:[#allocation5 + $0x158] sm:$0xff]
    %v95 = vld [vmem:[#allocation5 + $0x160] sm:$0xff]
    %v96 = vld [vmem:[#allocation5 + $0x168] sm:$0xff]
    %v97 = vld [vmem:[#allocation5 + $0x170] sm:$0xff]
    %v98 = vld [vmem:[#allocation5 + $0x178] sm:$0xff]
    %v99 = vld [vmem:[%s2] sm:$0x7]
    %v101 = vlaneseq
    %v102 = vshrl.u32 %v101, 7
    %v103 = vsub.s32 0, %v102
    %v104 = vrot.slane %v99, %v103
    %v105 = vlaneseq
    %v106 = vshrl.u32 %v105, 7
    %v107 = vsub.s32 1, %v106
    %v108 = vrot.slane %v99, %v107
    %v109 = vlaneseq
    %v110 = vshrl.u32 %v109, 7
    %v111 = vsub.s32 2, %v110
    %v112 = vrot.slane %v99, %v111
    %116 = vmatprep.subr.mxu0 %v97
    %117 = vmatpush1.msra.mxu0 %v96
    %118 = vmatprep.subr.mxu0 %v94
    %119 = vmatpush1.msra.mxu0 %v93
    %120 = vmatprep.subr.mxu0 %v91
    %121 = vmatpush1.msra.mxu0 %v90
    %122 = vmatprep.subr.mxu0 %v88
    %123 = vmatpush1.msra.mxu0 %v87
    %124 = vmatprep.subr.mxu0 %v85
    %125 = vmatpush1.msra.mxu0 %v84
    %126 = vmatprep.subr.mxu0 %v82
    %127 = vmatpush1.msra.mxu0 %v81
    %128 = vmatprep.subr.mxu0 %v79
    %129 = vmatpush1.msra.mxu0 %v78
    %130 = vmatprep.subr.mxu0 %v76
    %131 = vmatpush1.msra.mxu0 %v75
    %132 = vmatprep.subr.mxu0 %v73
    %133 = vmatpush1.msra.mxu0 %v72
    %134 = vmatprep.subr.mxu0 %v70
    %135 = vmatpush1.msra.mxu0 %v69
    %136 = vmatprep.subr.mxu0 %v67
    %137 = vmatpush1.msra.mxu0 %v66
    %138 = vmatprep.subr.mxu0 %v64
    %139 = vmatpush1.msra.mxu0 %v63
    %140 = vmatprep.subr.mxu0 %v61
    %141 = vmatpush1.msra.mxu0 %v60
    %142 = vmatprep.subr.mxu0 %v58
    %143 = vmatpush1.msra.mxu0 %v57
    %144 = vmatprep.subr.mxu0 %v55
    %145 = vmatpush1.msra.mxu0 %v54
    %146 = vmatprep.subr.mxu0 %v52
    %147 = vmatpush1.msra.mxu0 %v51
    %148 = vmatprep.subr.mxu0 0.0
    %149 = vmatpush2.msra.mxu0 0.0
    %150 = vmatprep.subr.mxu0 0.0
    %151 = vmatpush2.msra.mxu0 0.0
    %152 = vmatprep.subr.mxu0 0.0
    %153 = vmatpush2.msra.mxu0 0.0
    %154 = vmatprep.subr.mxu0 0.0
    %155 = vmatpush2.msra.mxu0 0.0
    %156 = vmatprep.subr.mxu0 0.0
    %157 = vmatpush2.msra.mxu0 0.0
    %158 = vmatprep.subr.mxu0 0.0
    %159 = vmatpush2.msra.mxu0 0.0
    %160 = vmatprep.subr.mxu0 0.0
    %161 = vmatpush2.msra.mxu0 0.0
    %162 = vmatprep.subr.mxu0 0.0
    %163 = vmatpush2.msra.mxu0 0.0
    %164 = vmatprep.subr.mxu0 0.0
    %165 = vmatpush2.msra.mxu0 0.0
    %166 = vmatprep.subr.mxu0 0.0
    %167 = vmatpush2.msra.mxu0 0.0
    %168 = vmatprep.subr.mxu0 0.0
    %169 = vmatpush2.msra.mxu0 0.0
    %170 = vmatprep.subr.mxu0 0.0
    %171 = vmatpush2.msra.mxu0 0.0
    %172 = vmatprep.subr.mxu0 0.0
    %173 = vmatpush2.msra.mxu0 0.0
    %174 = vmatprep.subr.mxu0 0.0
    %175 = vmatpush2.msra.mxu0 0.0
    %176 = vmatprep.subr.mxu0 0.0
    %177 = vmatpush2.msra.mxu0 0.0
    %178 = vmatprep.subr.mxu0 0.0
    %179 = vmatpush2.msra.mxu0 0.0
    %180 = vmatprep.mubr.f32.mxu0 0.0
    %181 = vmatmul.mubr.f32.gmra.mxu0 %v43
    %v182 = vpop.f32.mrf.mxu0
    %v183 = vadd.f32 %v104, %v182
    %v184 = vpop.f32.mrf.mxu0
    %v185 = vadd.f32 %v108, %v184
    %186 = vmatprep.mubr.f32.mxu0 0.0
    %187 = vmatmul.mubr.f32.gmra.mxu0 %v44
    %v188 = vpop.f32.mrf.mxu0
    %v189 = vadd.f32 %v104, %v188
    %v190 = vpop.f32.mrf.mxu0
    %v191 = vadd.f32 %v108, %v190
    %192 = vmatprep.mubr.f32.mxu0 0.0
    %193 = vmatmul.mubr.f32.gmra.mxu0 %v45
    %v194 = vpop.f32.mrf.mxu0
    %v195 = vadd.f32 %v104, %v194
    %v196 = vpop.f32.mrf.mxu0
    %v197 = vadd.f32 %v108, %v196
    %198 = vmatprep.mubr.f32.mxu0 0.0
    %199 = vmatmul.mubr.f32.gmra.mxu0 %v46
    %v200 = vpop.f32.mrf.mxu0
    %v201 = vadd.f32 %v104, %v200
    %v202 = vpop.f32.mrf.mxu0
    %v203 = vadd.f32 %v108, %v202
    %204 = vmatprep.mubr.f32.mxu0 0.0
    %205 = vmatmul.mubr.f32.gmra.mxu0 %v47
    %v206 = vpop.f32.mrf.mxu0
    %v207 = vadd.f32 %v104, %v206
    %v208 = vpop.f32.mrf.mxu0
    %v209 = vadd.f32 %v108, %v208
    %210 = vmatprep.mubr.f32.mxu0 0.0
    %211 = vmatmul.mubr.f32.gmra.mxu0 %v48
    %v212 = vpop.f32.mrf.mxu0
    %v213 = vadd.f32 %v104, %v212
    %v214 = vpop.f32.mrf.mxu0
    %v215 = vadd.f32 %v108, %v214
    %216 = vmatprep.mubr.f32.mxu0 0.0
    %217 = vmatmul.mubr.f32.gmra.mxu0 %v49
    %v218 = vpop.f32.mrf.mxu0
    %v219 = vadd.f32 %v104, %v218
    %v220 = vpop.f32.mrf.mxu0
    %v221 = vadd.f32 %v108, %v220
    %222 = vmatprep.mubr.f32.mxu0 0.0
    %223 = vmatmul.mubr.f32.gmra.mxu0 %v50
    %v224 = vpop.f32.mrf.mxu0
    %v225 = vadd.f32 %v104, %v224
    %v226 = vpop.f32.mrf.mxu0
    %v227 = vadd.f32 %v108, %v226
    %228 = vdwg.mxu0
    %229 = vmatprep.subr.mxu0 0.0
    %230 = vmatpush1.msra.mxu0 %v98
    %231 = vmatprep.subr.mxu0 0.0
    %232 = vmatpush1.msra.mxu0 %v95
    %233 = vmatprep.subr.mxu0 0.0
    %234 = vmatpush1.msra.mxu0 %v92
    %235 = vmatprep.subr.mxu0 0.0
    %236 = vmatpush1.msra.mxu0 %v89
    %237 = vmatprep.subr.mxu0 0.0
    %238 = vmatpush1.msra.mxu0 %v86
    %239 = vmatprep.subr.mxu0 0.0
    %240 = vmatpush1.msra.mxu0 %v83
    %241 = vmatprep.subr.mxu0 0.0
    %242 = vmatpush1.msra.mxu0 %v80
    %243 = vmatprep.subr.mxu0 0.0
    %244 = vmatpush1.msra.mxu0 %v77
    %245 = vmatprep.subr.mxu0 0.0
    %246 = vmatpush1.msra.mxu0 %v74
    %247 = vmatprep.subr.mxu0 0.0
    %248 = vmatpush1.msra.mxu0 %v71
    %249 = vmatprep.subr.mxu0 0.0
    %250 = vmatpush1.msra.mxu0 %v68
    %251 = vmatprep.subr.mxu0 0.0
    %252 = vmatpush1.msra.mxu0 %v65
    %253 = vmatprep.subr.mxu0 0.0
    %254 = vmatpush1.msra.mxu0 %v62
    %255 = vmatprep.subr.mxu0 0.0
    %256 = vmatpush1.msra.mxu0 %v59
    %257 = vmatprep.subr.mxu0 0.0
    %258 = vmatpush1.msra.mxu0 %v56
    %259 = vmatprep.subr.mxu0 0.0
    %260 = vmatpush1.msra.mxu0 %v53
    %261 = vmatprep.subr.mxu0 0.0
    %262 = vmatpush2.msra.mxu0 0.0
    %263 = vmatprep.subr.mxu0 0.0
    %264 = vmatpush2.msra.mxu0 0.0
    %265 = vmatprep.subr.mxu0 0.0
    %266 = vmatpush2.msra.mxu0 0.0
    %267 = vmatprep.subr.mxu0 0.0
    %268 = vmatpush2.msra.mxu0 0.0
    %269 = vmatprep.subr.mxu0 0.0
    %270 = vmatpush2.msra.mxu0 0.0
    %271 = vmatprep.subr.mxu0 0.0
    %272 = vmatpush2.msra.mxu0 0.0
    %273 = vmatprep.subr.mxu0 0.0
    %274 = vmatpush2.msra.mxu0 0.0
    %275 = vmatprep.subr.mxu0 0.0
    %276 = vmatpush2.msra.mxu0 0.0
    %277 = vmatprep.subr.mxu0 0.0
    %278 = vmatpush2.msra.mxu0 0.0
    %279 = vmatprep.subr.mxu0 0.0
    %280 = vmatpush2.msra.mxu0 0.0
    %281 = vmatprep.subr.mxu0 0.0
    %282 = vmatpush2.msra.mxu0 0.0
    %283 = vmatprep.subr.mxu0 0.0
    %284 = vmatpush2.msra.mxu0 0.0
    %285 = vmatprep.subr.mxu0 0.0
    %286 = vmatpush2.msra.mxu0 0.0
    %287 = vmatprep.subr.mxu0 0.0
    %288 = vmatpush2.msra.mxu0 0.0
    %289 = vmatprep.subr.mxu0 0.0
    %290 = vmatpush2.msra.mxu0 0.0
    %291 = vmatprep.subr.mxu0 0.0
    %292 = vmatpush2.msra.mxu0 0.0
    %293 = vmatprep.mubr.f32.mxu0 0.0
    %294 = vmatmul.mubr.f32.gmra.mxu0 %v43
    %v295 = vpop.f32.mrf.mxu0
    %v296 = vadd.f32 %v112, %v295
    %v297 = vpop.f32.mrf.mxu0
    %298 = vmatprep.mubr.f32.mxu0 0.0
    %299 = vmatmul.mubr.f32.gmra.mxu0 %v44
    %v300 = vpop.f32.mrf.mxu0
    %v301 = vadd.f32 %v112, %v300
    %v302 = vpop.f32.mrf.mxu0
    %303 = vmatprep.mubr.f32.mxu0 0.0
    %304 = vmatmul.mubr.f32.gmra.mxu0 %v45
    %v305 = vpop.f32.mrf.mxu0
    %v306 = vadd.f32 %v112, %v305
    %v307 = vpop.f32.mrf.mxu0
    %308 = vmatprep.mubr.f32.mxu0 0.0
    %309 = vmatmul.mubr.f32.gmra.mxu0 %v46
    %v310 = vpop.f32.mrf.mxu0
    %v311 = vadd.f32 %v112, %v310
    %v312 = vpop.f32.mrf.mxu0
    %313 = vmatprep.mubr.f32.mxu0 0.0
    %314 = vmatmul.mubr.f32.gmra.mxu0 %v47
    %v315 = vpop.f32.mrf.mxu0
    %v316 = vadd.f32 %v112, %v315
    %v317 = vpop.f32.mrf.mxu0
    %318 = vmatprep.mubr.f32.mxu0 0.0
    %319 = vmatmul.mubr.f32.gmra.mxu0 %v48
    %v320 = vpop.f32.mrf.mxu0
    %v321 = vadd.f32 %v112, %v320
    %v322 = vpop.f32.mrf.mxu0
    %323 = vmatprep.mubr.f32.mxu0 0.0
    %324 = vmatmul.mubr.f32.gmra.mxu0 %v49
    %v325 = vpop.f32.mrf.mxu0
    %v326 = vadd.f32 %v112, %v325
    %v327 = vpop.f32.mrf.mxu0
    %328 = vmatprep.mubr.f32.mxu0 0.0
    %329 = vmatmul.mubr.f32.gmra.mxu0 %v50
    %v330 = vpop.f32.mrf.mxu0
    %v331 = vadd.f32 %v112, %v330
    %v332 = vpop.f32.mrf.mxu0
    %333 = vdwg.mxu0
    %334 = vst [vmem:[#allocation7] sm:$0xff] %v183
    %335 = vst [vmem:[#allocation7 + $0x8] sm:$0xff] %v185
    %336 = vst [vmem:[#allocation7 + $0x10] sm:$0xff] %v296
    %337 = vst [vmem:[#allocation7 + $0x18] sm:$0xff] %v189
    %338 = vst [vmem:[#allocation7 + $0x20] sm:$0xff] %v191
    %339 = vst [vmem:[#allocation7 + $0x28] sm:$0xff] %v301
    %340 = vst [vmem:[#allocation7 + $0x30] sm:$0xff] %v195
    %341 = vst [vmem:[#allocation7 + $0x38] sm:$0xff] %v197
    %342 = vst [vmem:[#allocation7 + $0x40] sm:$0xff] %v306
    %343 = vst [vmem:[#allocation7 + $0x48] sm:$0xff] %v201
    %344 = vst [vmem:[#allocation7 + $0x50] sm:$0xff] %v203
    %345 = vst [vmem:[#allocation7 + $0x58] sm:$0xff] %v311
    %346 = vst [vmem:[#allocation7 + $0x60] sm:$0xff] %v207
    %347 = vst [vmem:[#allocation7 + $0x68] sm:$0xff] %v209
    %348 = vst [vmem:[#allocation7 + $0x70] sm:$0xff] %v316
    %349 = vst [vmem:[#allocation7 + $0x78] sm:$0xff] %v213
    %350 = vst [vmem:[#allocation7 + $0x80] sm:$0xff] %v215
    %351 = vst [vmem:[#allocation7 + $0x88] sm:$0xff] %v321
    %352 = vst [vmem:[#allocation7 + $0x90] sm:$0xff] %v219
    %353 = vst [vmem:[#allocation7 + $0x98] sm:$0xff] %v221
    %354 = vst [vmem:[#allocation7 + $0xa0] sm:$0xff] %v326
    %355 = vst [vmem:[#allocation7 + $0xa8] sm:$0xff] %v225
    %356 = vst [vmem:[#allocation7 + $0xb0] sm:$0xff] %v227
    %357 = vst [vmem:[#allocation7 + $0xb8] sm:$0xff] %v331
    // Predicated region
    $region22: #{tpu_custom_call.1} parent=1 // pred_check
      _
    $region23: #{tpu_custom_call.1} parent=1 // pred_check_branch
      %359 = sbr.rel (0) target = $region25
    $region24: #{tpu_custom_call.1} parent=1 // pred_region
      %s361 = ssub.s32 3072, 3072
      %362 = vsyncadd [#allocation4], %s361
      %s363 = sshll.u32 [#allocation7], 4
      %s364 = int_to_ptr.vmem [resolvable:$true] %s363
      %369 = dma.vmem_to_hbm [thread:$0]  %s364, 3072, %s3, [#allocation4], 384, 384, 24
    $region25: #{tpu_custom_call.1} parent=1 // pred_fallthru
      _
    // Predicated region
    $region26: #{tpu_custom_call.1} parent=1 // pred_check
      _
    $region27: #{tpu_custom_call.1} parent=1 // pred_check_branch
      %371 = sbr.rel (0) target = $region29
    $region28: #{tpu_custom_call.1} parent=1 // pred_region
      %372 = dma.done [#allocation4], 3072
    $region29: #{tpu_custom_call.1} parent=1 // pred_fallthru
      _
    %373 = vsyncpa [#allocation3], 1
    %374 = vsyncpa [#allocation6], 1
    %375 = vsyncpa [#allocation4], 1

</llo_original>
